<compile_context>
chip_gen: v6e
topology: v6e:2x2x1
jax: 0.10.0
libtpu: 0.0.40
codegen_flags: <defaults>
</compile_context>

<pallas_src>
import functools

import jax
import jax.numpy as jnp
from jax.experimental import pallas as pl
from jax.experimental.pallas import tpu as pltpu


def _st_block_kernel(x_ref, wf_ref, b_ref, gam_ref, bet_ref, rm_ref, bm_ref,
                     o_ref, *, eps):
    # x_ref: (1, C_in, T) — one (unpadded) batch element in VMEM
    x = x_ref[0]                                   # (C_in, T)
    c_in, t = x.shape

    # Time-boundary handling in VMEM (replaces the wrapper-side jnp.pad):
    # column t of x_prev holds x[:, t-1] (0 at t=0); x_next holds x[:, t+1].
    zcol = jnp.zeros((c_in, 1), jnp.float32)
    x_prev = jnp.concatenate([zcol, x[:, :t - 1]], axis=1)     # kw = 0
    x_next = jnp.concatenate([x[:, 1:], zcol], axis=1)         # kw = 2
    # im2col for width-3 conv: patches[kw*C_in + ci, t] = x_pad[ci, t + kw]
    patches = jnp.concatenate([x_prev, x, x_next], axis=0)     # (3*C_in, T)

    # Single fused conv matmul.  Fused row r = 2*co + h uses conv weight row
    # kh = 1 - h (H=1 input with H-padding 1 -> h_out=0 sees kh=1 only, etc.).
    y = jnp.dot(wf_ref[...], patches,
                preferred_element_type=jnp.float32) + b_ref[...]   # (2*C_out, T)

    # GroupNorm over (channels-in-group, H=2, T) == rows-in-group x T columns
    # of the fused tensor.  rm is pre-scaled by 1/(rows_per_group * T), so the
    # two tiny matmuls yield per-group mean and E[y^2] broadcast to channels.
    s = jnp.concatenate([jnp.sum(y, axis=-1, keepdims=True),
                         jnp.sum(y * y, axis=-1, keepdims=True)],
                        axis=-1)                                    # (2*C_out, 2)
    g = jnp.dot(rm_ref[...], s, preferred_element_type=jnp.float32)   # (G, 2)
    gb = jnp.dot(bm_ref[...], g, preferred_element_type=jnp.float32)  # (2*C_out, 2)
    mean = gb[:, 0:1]
    var = gb[:, 1:2] - mean * mean                 # biased variance (PyTorch GN)
    inv = jax.lax.rsqrt(var + eps)

    z = (y - mean) * (inv * gam_ref[...]) + bet_ref[...]
    o_ref[0] = z * jax.nn.sigmoid(z)               # SiLU, already in 2*co+h order


def spatiotemporal_conv_block(x, conv_w, conv_b, gn_w, gn_b, *, groups=4, eps=1e-5):
    """x: (B, C_in, T) float32 -> (B, 2*C_out, T) float32."""
    B, C_in, T = x.shape
    C_out = conv_w.shape[0]
    C2 = 2 * C_out
    gs2 = C2 // groups        # fused rows per GroupNorm group (= 2 * C_out/groups)

    # Fused im2col weight: wf[2*co + h, kw*C_in + ci] = conv_w[co, ci, 1-h, kw]
    wf = jnp.stack([conv_w[:, :, 1, :], conv_w[:, :, 0, :]], axis=1)  # (C_out, 2, C_in, 3)
    wf = wf.transpose(0, 1, 3, 2).reshape(C2, 3 * C_in)               # (2*C_out, 3*C_in)

    bias = jnp.repeat(conv_b, 2).reshape(C2, 1)     # fused row r=2*co+h -> conv_b[co]
    gam = jnp.repeat(gn_w, 2).reshape(C2, 1)
    bet = jnp.repeat(gn_b, 2).reshape(C2, 1)

    # Group-membership matrices (hoisted out of the kernel).  Fused row r's
    # group is r // gs2, which matches PyTorch's co // (C_out/groups).
    grp = jnp.arange(C2) // gs2
    bm = (grp[:, None] == jnp.arange(groups)[None, :]).astype(jnp.float32)  # (2*C_out, G)
    rm = bm.T / float(gs2 * T)                                              # (G, 2*C_out)

    kernel = functools.partial(_st_block_kernel, eps=eps)
    out = pl.pallas_call(
        kernel,
        out_shape=jax.ShapeDtypeStruct((B, C2, T), jnp.float32),
        grid=(B,),
        in_specs=[
            pl.BlockSpec((1, C_in, T), lambda b: (b, 0, 0)),     # per-batch slab
            pl.BlockSpec((C2, 3 * C_in), lambda b: (0, 0)),      # fused weights (resident)
            pl.BlockSpec((C2, 1), lambda b: (0, 0)),             # bias
            pl.BlockSpec((C2, 1), lambda b: (0, 0)),             # gamma
            pl.BlockSpec((C2, 1), lambda b: (0, 0)),             # beta
            pl.BlockSpec((groups, C2), lambda b: (0, 0)),        # reduce (pre-scaled)
            pl.BlockSpec((C2, groups), lambda b: (0, 0)),        # broadcast
        ],
        out_specs=pl.BlockSpec((1, C2, T), lambda b: (b, 0, 0)),
        compiler_params=pltpu.CompilerParams(
            dimension_semantics=("parallel",),
            vmem_limit_bytes=32 * 1024 * 1024),   # explicit, fits v5e/v6e/v7x scoped VMEM
    )(x, wf, bias, gam, bet, rm, bm)
    return out   # already (B, 2*C_out, T) in PyTorch's co*2+h channel order


def reference(x, conv_w, conv_b, gn_w, gn_b, groups=4, eps=1e-5):
    """Pure-JAX reference matching the PyTorch forward."""
    B, C_in, T = x.shape
    x2d = x[:, :, None, :]                                            # (B, C_in, 1, T)
    out = jax.lax.conv_general_dilated(
        x2d, conv_w, window_strides=(1, 1), padding=((1, 1), (1, 1)),
        dimension_numbers=("NCHW", "OIHW", "NCHW"))
    out = out + conv_b[None, :, None, None]                           # (B, C_out, 2, T)
    B_, C_out, H, W = out.shape
    og = out.reshape(B_, groups, C_out // groups, H, W)
    mean = og.mean(axis=(2, 3, 4), keepdims=True)
    var = og.var(axis=(2, 3, 4), keepdims=True)
    og = (og - mean) * jax.lax.rsqrt(var + eps)
    out = og.reshape(B_, C_out, H, W) * gn_w[None, :, None, None] + gn_b[None, :, None, None]
    out = out * jax.nn.sigmoid(out)
    return out.reshape(B_, -1, W)


if __name__ == "__main__":
    key = jax.random.PRNGKey(0)
    B, C_in, C_out, T = 2, 4, 8, 16   # out_channels divisible by 4 (GroupNorm groups)
    k1, k2, k3, k4, k5 = jax.random.split(key, 5)

    x = jax.random.normal(k1, (B, C_in, T), jnp.float32)
    fan_in = C_in * 2 * 3
    bound = 1.0 / (fan_in ** 0.5)
    conv_w = jax.random.uniform(k2, (C_out, C_in, 2, 3), jnp.float32, -bound, bound)
    conv_b = jax.random.uniform(k3, (C_out,), jnp.float32, -bound, bound)
    gn_w = 1.0 + 0.1 * jax.random.normal(k4, (C_out,), jnp.float32)
    gn_b = 0.1 * jax.random.normal(k5, (C_out,), jnp.float32)

    out = spatiotemporal_conv_block(x, conv_w, conv_b, gn_w, gn_b)
    out = jax.block_until_ready(out)

    ref = reference(x, conv_w, conv_b, gn_w, gn_b)
    assert out.shape == (B, 2 * C_out, T), out.shape
    assert jnp.allclose(out, ref, atol=1e-4, rtol=1e-4), float(jnp.max(jnp.abs(out - ref)))
    print("KERNEL_OK")
</pallas_src>

<mosaic_0001>
module attributes {stable_mosaic.version = 11 : i64} {
  func.func @_st_block_kernel(%arg0: i32, %arg1: memref<1x4x16xf32, #tpu.memory_space<vmem>>, %arg2: memref<16x12xf32, #tpu.memory_space<vmem>>, %arg3: memref<16x1xf32, #tpu.memory_space<vmem>>, %arg4: memref<16x1xf32, #tpu.memory_space<vmem>>, %arg5: memref<16x1xf32, #tpu.memory_space<vmem>>, %arg6: memref<4x16xf32, #tpu.memory_space<vmem>>, %arg7: memref<16x4xf32, #tpu.memory_space<vmem>>, %arg8: memref<1x16x16xf32, #tpu.memory_space<vmem>>) attributes {dimension_semantics = [#tpu.dimension_semantics<parallel>], iteration_bounds = array<i64: 2>, scalar_prefetch = 0 : i64, scratch_operands = 0 : i64, tpu.core_type = #tpu.core_type<tc>, window_params = [{transform_indices = @transform_0, window_bounds = array<i64: 1, 4, 16>}, {pipeline_mode = #tpu.pipeline_mode<synchronous>, transform_indices = @transform_1, window_bounds = array<i64: 16, 12>}, {pipeline_mode = #tpu.pipeline_mode<synchronous>, transform_indices = @transform_2, window_bounds = array<i64: 16, 1>}, {pipeline_mode = #tpu.pipeline_mode<synchronous>, transform_indices = @transform_3, window_bounds = array<i64: 16, 1>}, {pipeline_mode = #tpu.pipeline_mode<synchronous>, transform_indices = @transform_4, window_bounds = array<i64: 16, 1>}, {pipeline_mode = #tpu.pipeline_mode<synchronous>, transform_indices = @transform_5, window_bounds = array<i64: 4, 16>}, {pipeline_mode = #tpu.pipeline_mode<synchronous>, transform_indices = @transform_6, window_bounds = array<i64: 16, 4>}, {transform_indices = @transform_7, window_bounds = array<i64: 1, 16, 16>}]} {
    %c0 = arith.constant 0 : index
    %c0_0 = arith.constant 0 : index
    %c0_1 = arith.constant 0 : index
    %0 = vector.load %arg1[%c0, %c0_0, %c0_1] : memref<1x4x16xf32, #tpu.memory_space<vmem>>, vector<1x4x16xf32>
    %1 = vector.shape_cast %0 : vector<1x4x16xf32> to vector<4x16xf32>
    %cst = arith.constant 0.000000e+00 : f32
    %2 = vector.broadcast %cst : f32 to vector<4x1xf32>
    %3 = vector.extract_strided_slice %1 {offsets = [0, 0], sizes = [4, 15], strides = [1, 1]} : vector<4x16xf32> to vector<4x15xf32>
    %4 = tpu.concatenate %2, %3 in 1 : vector<4x1xf32>, vector<4x15xf32> -> vector<4x16xf32>
    %5 = vector.extract_strided_slice %1 {offsets = [0, 1], sizes = [4, 15], strides = [1, 1]} : vector<4x16xf32> to vector<4x15xf32>
    %6 = tpu.concatenate %5, %2 in 1 : vector<4x15xf32>, vector<4x1xf32> -> vector<4x16xf32>
    %7 = tpu.concatenate %4, %1, %6 in 0 : vector<4x16xf32>, vector<4x16xf32>, vector<4x16xf32> -> vector<12x16xf32>
    %c0_2 = arith.constant 0 : index
    %c0_3 = arith.constant 0 : index
    %8 = vector.load %arg2[%c0_2, %c0_3] : memref<16x12xf32, #tpu.memory_space<vmem>>, vector<16x12xf32>
    %cst_4 = arith.constant dense<0.000000e+00> : vector<16x16xf32>
    %9 = tpu.matmul %8, %7, %cst_4 {dimension_numbers = #tpu.dot_dimension_numbers<[1], [0], [0], [1], [0, 0, 1, 1], [], []>} : vector<16x12xf32>, vector<12x16xf32>, vector<16x16xf32> -> vector<16x16xf32>
    %c0_5 = arith.constant 0 : index
    %c0_6 = arith.constant 0 : index
    %10 = vector.load %arg3[%c0_5, %c0_6] : memref<16x1xf32, #tpu.memory_space<vmem>>, vector<16x1xf32>
    %11 = vector.broadcast %10 : vector<16x1xf32> to vector<16x16xf32>
    %12 = arith.addf %9, %11 : vector<16x16xf32>
    %cst_7 = arith.constant dense<0.000000e+00> : vector<16xf32>
    %13 = vector.multi_reduction <add>, %12, %cst_7 [1] : vector<16x16xf32> to vector<16xf32>
    %14 = vector.shape_cast %13 : vector<16xf32> to vector<16x1xf32>
    %15 = arith.mulf %12, %12 : vector<16x16xf32>
    %cst_8 = arith.constant dense<0.000000e+00> : vector<16xf32>
    %16 = vector.multi_reduction <add>, %15, %cst_8 [1] : vector<16x16xf32> to vector<16xf32>
    %17 = vector.shape_cast %16 : vector<16xf32> to vector<16x1xf32>
    %18 = tpu.concatenate %14, %17 in 1 : vector<16x1xf32>, vector<16x1xf32> -> vector<16x2xf32>
    %c0_9 = arith.constant 0 : index
    %c0_10 = arith.constant 0 : index
    %19 = vector.load %arg6[%c0_9, %c0_10] : memref<4x16xf32, #tpu.memory_space<vmem>>, vector<4x16xf32>
    %cst_11 = arith.constant dense<0.000000e+00> : vector<4x2xf32>
    %20 = tpu.matmul %19, %18, %cst_11 {dimension_numbers = #tpu.dot_dimension_numbers<[1], [0], [0], [1], [0, 0, 1, 1], [], []>} : vector<4x16xf32>, vector<16x2xf32>, vector<4x2xf32> -> vector<4x2xf32>
    %c0_12 = arith.constant 0 : index
    %c0_13 = arith.constant 0 : index
    %21 = vector.load %arg7[%c0_12, %c0_13] : memref<16x4xf32, #tpu.memory_space<vmem>>, vector<16x4xf32>
    %cst_14 = arith.constant dense<0.000000e+00> : vector<16x2xf32>
    %22 = tpu.matmul %21, %20, %cst_14 {dimension_numbers = #tpu.dot_dimension_numbers<[1], [0], [0], [1], [0, 0, 1, 1], [], []>} : vector<16x4xf32>, vector<4x2xf32>, vector<16x2xf32> -> vector<16x2xf32>
    %23 = vector.extract_strided_slice %22 {offsets = [0, 0], sizes = [16, 1], strides = [1, 1]} : vector<16x2xf32> to vector<16x1xf32>
    %24 = vector.extract_strided_slice %22 {offsets = [0, 1], sizes = [16, 1], strides = [1, 1]} : vector<16x2xf32> to vector<16x1xf32>
    %25 = arith.mulf %23, %23 : vector<16x1xf32>
    %26 = arith.subf %24, %25 : vector<16x1xf32>
    %cst_15 = arith.constant 9.99999974E-6 : f32
    %27 = vector.broadcast %cst_15 : f32 to vector<16x1xf32>
    %28 = arith.addf %26, %27 : vector<16x1xf32>
    %29 = math.rsqrt %28 : vector<16x1xf32>
    %30 = vector.broadcast %23 : vector<16x1xf32> to vector<16x16xf32>
    %31 = arith.subf %12, %30 : vector<16x16xf32>
    %c0_16 = arith.constant 0 : index
    %c0_17 = arith.constant 0 : index
    %32 = vector.load %arg4[%c0_16, %c0_17] : memref<16x1xf32, #tpu.memory_space<vmem>>, vector<16x1xf32>
    %33 = arith.mulf %29, %32 : vector<16x1xf32>
    %34 = vector.broadcast %33 : vector<16x1xf32> to vector<16x16xf32>
    %35 = arith.mulf %31, %34 : vector<16x16xf32>
    %c0_18 = arith.constant 0 : index
    %c0_19 = arith.constant 0 : index
    %36 = vector.load %arg5[%c0_18, %c0_19] : memref<16x1xf32, #tpu.memory_space<vmem>>, vector<16x1xf32>
    %37 = vector.broadcast %36 : vector<16x1xf32> to vector<16x16xf32>
    %38 = arith.addf %35, %37 : vector<16x16xf32>
    %39 = arith.negf %38 : vector<16x16xf32>
    %40 = math.exp %39 : vector<16x16xf32>
    %cst_20 = arith.constant 1.000000e+00 : f32
    %41 = vector.broadcast %cst_20 : f32 to vector<16x16xf32>
    %42 = arith.addf %41, %40 : vector<16x16xf32>
    %43 = arith.divf %41, %42 : vector<16x16xf32>
    %44 = arith.mulf %38, %43 : vector<16x16xf32>
    %c0_21 = arith.constant 0 : index
    %c0_22 = arith.constant 0 : index
    %c0_23 = arith.constant 0 : index
    %45 = vector.load %arg8[%c0_21, %c0_22, %c0_23] : memref<1x16x16xf32, #tpu.memory_space<vmem>>, vector<1x16x16xf32>
    %46 = vector.shape_cast %45 : vector<1x16x16xf32> to vector<16x16xf32>
    %47 = vector.shape_cast %44 : vector<16x16xf32> to vector<1x16x16xf32>
    tpu.vector_store %arg8[%c0_21, %c0_22, %c0_23], %47 {strides = array<i32>} : memref<1x16x16xf32, #tpu.memory_space<vmem>>, vector<1x16x16xf32>,
    return
  }
  func.func @transform_0(%arg0: i32) -> (i32, i32, i32) {
    %c0_i32 = arith.constant 0 : i32
    %c0_i32_0 = arith.constant 0 : i32
    %c0_i32_1 = arith.constant 0 : i32
    return %arg0, %c0_i32, %c0_i32_0 : i32, i32, i32
  }
  func.func @transform_1(%arg0: i32) -> (i32, i32) {
    %c0_i32 = arith.constant 0 : i32
    %c0_i32_0 = arith.constant 0 : i32
    %c0_i32_1 = arith.constant 0 : i32
    return %c0_i32, %c0_i32_0 : i32, i32
  }
  func.func @transform_2(%arg0: i32) -> (i32, i32) {
    %c0_i32 = arith.constant 0 : i32
    %c0_i32_0 = arith.constant 0 : i32
    %c0_i32_1 = arith.constant 0 : i32
    return %c0_i32, %c0_i32_0 : i32, i32
  }
  func.func @transform_3(%arg0: i32) -> (i32, i32) {
    %c0_i32 = arith.constant 0 : i32
    %c0_i32_0 = arith.constant 0 : i32
    %c0_i32_1 = arith.constant 0 : i32
    return %c0_i32, %c0_i32_0 : i32, i32
  }
  func.func @transform_4(%arg0: i32) -> (i32, i32) {
    %c0_i32 = arith.constant 0 : i32
    %c0_i32_0 = arith.constant 0 : i32
    %c0_i32_1 = arith.constant 0 : i32
    return %c0_i32, %c0_i32_0 : i32, i32
  }
  func.func @transform_5(%arg0: i32) -> (i32, i32) {
    %c0_i32 = arith.constant 0 : i32
    %c0_i32_0 = arith.constant 0 : i32
    %c0_i32_1 = arith.constant 0 : i32
    return %c0_i32, %c0_i32_0 : i32, i32
  }
  func.func @transform_6(%arg0: i32) -> (i32, i32) {
    %c0_i32 = arith.constant 0 : i32
    %c0_i32_0 = arith.constant 0 : i32
    %c0_i32_1 = arith.constant 0 : i32
    return %c0_i32, %c0_i32_0 : i32, i32
  }
  func.func @transform_7(%arg0: i32) -> (i32, i32, i32) {
    %c0_i32 = arith.constant 0 : i32
    %c0_i32_0 = arith.constant 0 : i32
    %c0_i32_1 = arith.constant 0 : i32
    return %arg0, %c0_i32, %c0_i32_0 : i32, i32, i32
  }
}

</mosaic_0001>

<llo_original>
// kernel: tpu_custom_call.1
$region0: #{tpu_custom_call.1}
  #allocation0 [shape = 'u32[]', space=smem, size = 0x4, offset = 0x4, fixed_abs, tag = 'smem constant byte address 0x4 - core index']
  #allocation1 [shape = 'u32[144,128]{1,0:T(1,128)}', space=vmem, size = 0x12000, scoped, tag = 'internal scratch']
  %s0 = inlined_call_operand.vmem [shape: f32[2,4,16], index: 0, kind: input, shape index: {}]
  %s1 = inlined_call_operand.vmem [shape: f32[16,12], index: 1, kind: input, shape index: {}]
  %s2 = inlined_call_operand.vmem [shape: f32[16,1], index: 2, kind: input, shape index: {}]
  %s3 = inlined_call_operand.vmem [shape: f32[16,1], index: 3, kind: input, shape index: {}]
  %s4 = inlined_call_operand.vmem [shape: f32[16,1], index: 4, kind: input, shape index: {}]
  %s5 = inlined_call_operand.vmem [shape: f32[4,16], index: 5, kind: input, shape index: {}]
  %s6 = inlined_call_operand.vmem [shape: f32[16,4], index: 6, kind: input, shape index: {}]
  %s7 = inlined_call_operand.hbm [shape: f32[2,16,16], index: 7, kind: output, shape index: {}]
  %s8 = sld [smem:[#allocation0]]
  $region61: #{tpu_custom_call.1} parent=0
    _
  %s10 = ssub.s32 1, %s8
  %s11 = scalar_select 0, %s10, %s8
  $region1: #{tpu_custom_call.1} parent=0
    #allocation2 [shape = 'u8[16384]{0}', space=vmem, size = 0x4000, scoped, tag = 'output window, operand 0']
    #allocation3 [shape = 's32[2]{0}', space=sflag, size = 0x8, scoped, tag = 'scoped memory for tpu_custom_call.1']
    %12 = vsyncpa [#allocation3], 0
    %s13 = scalar_lea.sflag [#allocation3], 1
    %14 = vsyncpa %s13, 0
    loop: start=0, step=1, limit=4
    $region2: #{tpu_custom_call.1} parent=1 // loop_pre_header
      _
    $region3: #{tpu_custom_call.1} parent=1 // loop_header
      %s16 = sphi 0, %s20
      %p17 = scmp.ge.s32.totalorder %s16, 4
      %s26 = sphi 0, %s28
      %s29 = sphi 0, %s26
      %s30 = sphi 0, %s29
      %s46 = sphi 0, %s30
      %s50 = sphi 0, %s50
      %s52 = sphi 0, %s50
      %s53 = sphi 0, %s52
      %s67 = sphi 0, %s53
      %s71 = sphi 0, %s71
      %s73 = sphi 0, %s71
      %s74 = sphi 0, %s73
      %s88 = sphi 0, %s74
      %s92 = sphi 0, %s92
      %s94 = sphi 0, %s92
      %s95 = sphi 0, %s94
      %s109 = sphi 0, %s95
      %s113 = sphi 0, %s113
      %s115 = sphi 0, %s113
      %s116 = sphi 0, %s115
      %s130 = sphi 0, %s116
      %s134 = sphi 0, %s134
      %s136 = sphi 0, %s134
      %s137 = sphi 0, %s136
      %s151 = sphi 0, %s137
      %s155 = sphi 0, %s155
      %s157 = sphi 0, %s155
      %s158 = sphi 0, %s157
      %s172 = sphi 0, %s158
      %s178 = sphi 0, %s180
      %s181 = sphi 0, %s178
      %s182 = sphi 0, %s181
      %s198 = sphi 0, %s182
    $region4: #{tpu_custom_call.1} parent=1 // loop_header_branch
      %19 = sbr.rel (%p17) target = $region8
    $region5: #{tpu_custom_call.1} parent=1 // loop_body
      %s21 = ssub.s32 %s16, 1
      %s22 = ssub.s32 %s16, 2
      %s23 = sadd.s32 %s16, 1
      %s24 = ssub.s32 %s16, %s23
      %p25 = scmp.eq.s32.totalorder %s24, 0
      %s27 = sadd.s32 %s26, 1
      %s28 = scalar_select %p25, %s26, %s27
      %p31 = pneg %p25
      %p32 = scmp.eq.s32.totalorder %s16, 1
      %p33 = por %p31, %p32
      %p34 = scmp.ne.s32.totalorder %s26, %s29
      %p35 = scmp.eq.s32.totalorder %s16, 0
      %p36 = por %p34, %p35
      %p37 = scmp.ne.s32.totalorder %s26, %s29
      %p38 = scmp.eq.s32.totalorder %s21, 1
      %p39 = por %p37, %p38
      %p40 = scmp.ne.s32.totalorder %s29, %s30
      %p41 = scmp.eq.s32.totalorder %s21, 0
      %p42 = por %p40, %p41
      %p43 = scmp.ne.s32.totalorder %s29, %s30
      %p44 = scmp.eq.s32.totalorder %s22, 1
      %p45 = por %p43, %p44
      %p47 = scmp.ne.s32.totalorder %s30, %s46
      %p48 = scmp.eq.s32.totalorder %s22, 0
      %p49 = por %p47, %p48
      %s51 = sadd.s32 %s50, 1
      %p54 = scmp.eq.s32.totalorder %s16, 1
      %p55 = scmp.ne.s32.totalorder %s50, %s52
      %p56 = scmp.eq.s32.totalorder %s16, 0
      %p57 = por %p55, %p56
      %p58 = scmp.ne.s32.totalorder %s50, %s52
      %p59 = scmp.eq.s32.totalorder %s21, 1
      %p60 = por %p58, %p59
      %p61 = scmp.ne.s32.totalorder %s52, %s53
      %p62 = scmp.eq.s32.totalorder %s21, 0
      %p63 = por %p61, %p62
      %p64 = scmp.ne.s32.totalorder %s52, %s53
      %p65 = scmp.eq.s32.totalorder %s22, 1
      %p66 = por %p64, %p65
      %p68 = scmp.ne.s32.totalorder %s53, %s67
      %p69 = scmp.eq.s32.totalorder %s22, 0
      %p70 = por %p68, %p69
      %s72 = sadd.s32 %s71, 1
      %p75 = scmp.eq.s32.totalorder %s16, 1
      %p76 = scmp.ne.s32.totalorder %s71, %s73
      %p77 = scmp.eq.s32.totalorder %s16, 0
      %p78 = por %p76, %p77
      %p79 = scmp.ne.s32.totalorder %s71, %s73
      %p80 = scmp.eq.s32.totalorder %s21, 1
      %p81 = por %p79, %p80
      %p82 = scmp.ne.s32.totalorder %s73, %s74
      %p83 = scmp.eq.s32.totalorder %s21, 0
      %p84 = por %p82, %p83
      %p85 = scmp.ne.s32.totalorder %s73, %s74
      %p86 = scmp.eq.s32.totalorder %s22, 1
      %p87 = por %p85, %p86
      %p89 = scmp.ne.s32.totalorder %s74, %s88
      %p90 = scmp.eq.s32.totalorder %s22, 0
      %p91 = por %p89, %p90
      %s93 = sadd.s32 %s92, 1
      %p96 = scmp.eq.s32.totalorder %s16, 1
      %p97 = scmp.ne.s32.totalorder %s92, %s94
      %p98 = scmp.eq.s32.totalorder %s16, 0
      %p99 = por %p97, %p98
      %p100 = scmp.ne.s32.totalorder %s92, %s94
      %p101 = scmp.eq.s32.totalorder %s21, 1
      %p102 = por %p100, %p101
      %p103 = scmp.ne.s32.totalorder %s94, %s95
      %p104 = scmp.eq.s32.totalorder %s21, 0
      %p105 = por %p103, %p104
      %p106 = scmp.ne.s32.totalorder %s94, %s95
      %p107 = scmp.eq.s32.totalorder %s22, 1
      %p108 = por %p106, %p107
      %p110 = scmp.ne.s32.totalorder %s95, %s109
      %p111 = scmp.eq.s32.totalorder %s22, 0
      %p112 = por %p110, %p111
      %s114 = sadd.s32 %s113, 1
      %p117 = scmp.eq.s32.totalorder %s16, 1
      %p118 = scmp.ne.s32.totalorder %s113, %s115
      %p119 = scmp.eq.s32.totalorder %s16, 0
      %p120 = por %p118, %p119
      %p121 = scmp.ne.s32.totalorder %s113, %s115
      %p122 = scmp.eq.s32.totalorder %s21, 1
      %p123 = por %p121, %p122
      %p124 = scmp.ne.s32.totalorder %s115, %s116
      %p125 = scmp.eq.s32.totalorder %s21, 0
      %p126 = por %p124, %p125
      %p127 = scmp.ne.s32.totalorder %s115, %s116
      %p128 = scmp.eq.s32.totalorder %s22, 1
      %p129 = por %p127, %p128
      %p131 = scmp.ne.s32.totalorder %s116, %s130
      %p132 = scmp.eq.s32.totalorder %s22, 0
      %p133 = por %p131, %p132
      %s135 = sadd.s32 %s134, 1
      %p138 = scmp.eq.s32.totalorder %s16, 1
      %p139 = scmp.ne.s32.totalorder %s134, %s136
      %p140 = scmp.eq.s32.totalorder %s16, 0
      %p141 = por %p139, %p140
      %p142 = scmp.ne.s32.totalorder %s134, %s136
      %p143 = scmp.eq.s32.totalorder %s21, 1
      %p144 = por %p142, %p143
      %p145 = scmp.ne.s32.totalorder %s136, %s137
      %p146 = scmp.eq.s32.totalorder %s21, 0
      %p147 = por %p145, %p146
      %p148 = scmp.ne.s32.totalorder %s136, %s137
      %p149 = scmp.eq.s32.totalorder %s22, 1
      %p150 = por %p148, %p149
      %p152 = scmp.ne.s32.totalorder %s137, %s151
      %p153 = scmp.eq.s32.totalorder %s22, 0
      %p154 = por %p152, %p153
      %s156 = sadd.s32 %s155, 1
      %p159 = scmp.eq.s32.totalorder %s16, 1
      %p160 = scmp.ne.s32.totalorder %s155, %s157
      %p161 = scmp.eq.s32.totalorder %s16, 0
      %p162 = por %p160, %p161
      %p163 = scmp.ne.s32.totalorder %s155, %s157
      %p164 = scmp.eq.s32.totalorder %s21, 1
      %p165 = por %p163, %p164
      %p166 = scmp.ne.s32.totalorder %s157, %s158
      %p167 = scmp.eq.s32.totalorder %s21, 0
      %p168 = por %p166, %p167
      %p169 = scmp.ne.s32.totalorder %s157, %s158
      %p170 = scmp.eq.s32.totalorder %s22, 1
      %p171 = por %p169, %p170
      %p173 = scmp.ne.s32.totalorder %s158, %s172
      %p174 = scmp.eq.s32.totalorder %s22, 0
      %p175 = por %p173, %p174
      %s176 = ssub.s32 %s16, %s23
      %p177 = scmp.eq.s32.totalorder %s176, 0
      %s179 = sadd.s32 %s178, 1
      %s180 = scalar_select %p177, %s178, %s179
      %p183 = pneg %p177
      %p184 = scmp.eq.s32.totalorder %s16, 1
      %p185 = por %p183, %p184
      %p186 = scmp.ne.s32.totalorder %s178, %s181
      %p187 = scmp.eq.s32.totalorder %s16, 0
      %p188 = por %p186, %p187
      %p189 = scmp.ne.s32.totalorder %s178, %s181
      %p190 = scmp.eq.s32.totalorder %s21, 1
      %p191 = por %p189, %p190
      %p192 = scmp.ne.s32.totalorder %s181, %s182
      %p193 = scmp.eq.s32.totalorder %s21, 0
      %p194 = por %p192, %p193
      %p195 = scmp.ne.s32.totalorder %s181, %s182
      %p196 = scmp.eq.s32.totalorder %s22, 1
      %p197 = por %p195, %p196
      %p199 = scmp.ne.s32.totalorder %s182, %s198
      %p200 = scmp.eq.s32.totalorder %s22, 0
      %p201 = por %p199, %p200
      %p202 = scmp.le.s32.totalorder 1, %s16
      %p203 = scmp.lt.s32.totalorder %s16, 3
      %p204 = pnand %p202, %p203
      %p205 = pneg %p204
      // Predicated region
      $region9: #{tpu_custom_call.1} parent=5 // pred_check
        _
      $region10: #{tpu_custom_call.1} parent=5 // pred_check_branch
        %207 = sbr.rel (%p204) target = $region12
      $region11: #{tpu_custom_call.1} parent=5 // pred_region
        %s208 = ssub.s32 %s16, 1
        // Predicated region
        $region13: #{tpu_custom_call.1} parent=11 // pred_check
          %p209 = pneg %p63
        $region14: #{tpu_custom_call.1} parent=11 // pred_check_branch
          %211 = sbr.rel (%p209) target = $region16
        $region15: #{tpu_custom_call.1} parent=11 // pred_region
          _
        $region16: #{tpu_custom_call.1} parent=11 // pred_fallthru
          _
        // Predicated region
        $region17: #{tpu_custom_call.1} parent=11 // pred_check
          %p212 = pneg %p84
        $region18: #{tpu_custom_call.1} parent=11 // pred_check_branch
          %214 = sbr.rel (%p212) target = $region20
        $region19: #{tpu_custom_call.1} parent=11 // pred_region
          _
        $region20: #{tpu_custom_call.1} parent=11 // pred_fallthru
          _
        // Predicated region
        $region21: #{tpu_custom_call.1} parent=11 // pred_check
          %p215 = pneg %p105
        $region22: #{tpu_custom_call.1} parent=11 // pred_check_branch
          %217 = sbr.rel (%p215) target = $region24
        $region23: #{tpu_custom_call.1} parent=11 // pred_region
          _
        $region24: #{tpu_custom_call.1} parent=11 // pred_fallthru
          _
        // Predicated region
        $region25: #{tpu_custom_call.1} parent=11 // pred_check
          %p218 = pneg %p126
        $region26: #{tpu_custom_call.1} parent=11 // pred_check_branch
          %220 = sbr.rel (%p218) target = $region28
        $region27: #{tpu_custom_call.1} parent=11 // pred_region
          _
        $region28: #{tpu_custom_call.1} parent=11 // pred_fallthru
          _
        // Predicated region
        $region29: #{tpu_custom_call.1} parent=11 // pred_check
          %p221 = pneg %p147
        $region30: #{tpu_custom_call.1} parent=11 // pred_check_branch
          %223 = sbr.rel (%p221) target = $region32
        $region31: #{tpu_custom_call.1} parent=11 // pred_region
          _
        $region32: #{tpu_custom_call.1} parent=11 // pred_fallthru
          _
        // Predicated region
        $region33: #{tpu_custom_call.1} parent=11 // pred_check
          %p224 = pneg %p168
        $region34: #{tpu_custom_call.1} parent=11 // pred_check_branch
          %226 = sbr.rel (%p224) target = $region36
        $region35: #{tpu_custom_call.1} parent=11 // pred_region
          _
        $region36: #{tpu_custom_call.1} parent=11 // pred_fallthru
          _
      $region12: #{tpu_custom_call.1} parent=5 // pred_fallthru
        _
      %p227 = scmp.lt.s32.totalorder %s16, 2
      // Predicated region
      $region37: #{tpu_custom_call.1} parent=5 // pred_check
        %p228 = pneg %p227
      $region38: #{tpu_custom_call.1} parent=5 // pred_check_branch
        %230 = sbr.rel (%p228) target = $region40
      $region39: #{tpu_custom_call.1} parent=5 // pred_region
        // Predicated region
        $region41: #{tpu_custom_call.1} parent=39 // pred_check
          %p231 = pneg %p36
        $region42: #{tpu_custom_call.1} parent=39 // pred_check_branch
          %233 = sbr.rel (%p231) target = $region44
        $region43: #{tpu_custom_call.1} parent=39 // pred_region
          %p234 = scmp.lt.s32.totalorder %s16, 1
          %s235 = scalar_select %p234, %s16, 1
          %s236 = smul.addr %s235, 4
          %s237 = scalar_lea.vmem %s0, %s236
        $region44: #{tpu_custom_call.1} parent=39 // pred_fallthru
          _
      $region40: #{tpu_custom_call.1} parent=5 // pred_fallthru
        _
      %p238 = scmp.le.s32.totalorder 1, %s16
      %p239 = scmp.lt.s32.totalorder %s16, 3
      %p240 = pnand %p238, %p239
      %p241 = pneg %p240
      // Predicated region
      $region45: #{tpu_custom_call.1} parent=5 // pred_check
        _
      $region46: #{tpu_custom_call.1} parent=5 // pred_check_branch
        %243 = sbr.rel (%p240) target = $region48
      $region47: #{tpu_custom_call.1} parent=5 // pred_region
        %s244 = ssub.s32 %s16, 1
        %p245 = scmp.lt.s32.totalorder %s21, 1
        %s246 = scalar_select %p245, %s21, 1
        %s247 = smul.addr %s246, 4
        %s248 = scalar_lea.vmem %s0, %s247
        %p249 = pneg %p42
        %p250 = pneg %p39
        %p251 = pneg %p63
        %p252 = pneg %p60
        %p253 = pneg %p84
        %p254 = pneg %p81
        %p255 = pneg %p105
        %p256 = pneg %p102
        %p257 = pneg %p126
        %p258 = pneg %p123
        %p259 = pneg %p147
        %p260 = pneg %p144
        %p261 = pneg %p168
        %p262 = pneg %p165
        %p263 = pneg %p194
        %p264 = pneg %p191
        %s265 = sand.u32 %s181, 1
        %s266 = scalar_lea.sflag [#allocation3], %s265
        %s267 = sand.u32 %s181, 1
        %s268 = smul.addr %s267, 16
        %s269 = scalar_lea.vmem [#allocation2], %s268
        %p270 = scmp.lt.s32.totalorder %s21, 1
        %s271 = scalar_select %p270, %s21, 1
        %s272 = smul.addr %s271, 4
        %s273 = scalar_lea.vmem %s0, %s272
        %v274 = vld [vmem:[%s273] sm:$0xf]
        %276 = vrot.lane.b32.xlu0 %v274, 1
        %v277 = vpop.permute.xlu0 %276
        %vm279 = vcmask 7168
        %v280 = vsel %vm279, 0.0, %v277
        %281 = vrot.lane.b32.xlu0 %v274, 127
        %v282 = vpop.permute.xlu0 %281
        %vm284 = vcmask 121856
        %v285 = vsel %vm284, %v282, 0.0
        %v286 = vrot.slane %v274, 4
        %vm288 = vcmask 1043456
        %v289 = vsel %vm288, %v280, %v286
        %v290 = vld [vmem:[%s1] sm:$0xff]
        %v291 = vld [vmem:[%s1 + $0x8] sm:$0xff]
        %v292 = vld [vmem:[%s2] sm:$0xff]
        %v293 = vld [vmem:[%s2 + $0x8] sm:$0xff]
        %295 = vset.pattern.permute.xlu0 0
        %296 = vperm.xlu0 %295, %v292
        %v297 = vpop.permute.xlu0 %296
        %300 = vset.pattern.permute.xlu0 0
        %301 = vperm.xlu0 %300, %v293
        %v302 = vpop.permute.xlu0 %301
        %vm304 = vcmask 97280
        %v306 = vsel %vm304, %v290, 0
        %v309 = vsel %vm304, %v291, 0
        %v312 = vsel %vm288, %v285, 0
        %314 = vmatprep.subr.mxu0 0.0
        %315 = vmatpush1.msra.mxu0 0.0
        %316 = vmatprep.subr.mxu0 0.0
        %317 = vmatpush1.msra.mxu0 0.0
        %318 = vmatprep.subr.mxu0 0.0
        %319 = vmatpush1.msra.mxu0 0.0
        %320 = vmatprep.subr.mxu0 0.0
        %321 = vmatpush1.msra.mxu0 0.0
        %322 = vmatprep.subr.mxu0 0.0
        %323 = vmatpush1.msra.mxu0 0.0
        %324 = vmatprep.subr.mxu0 0.0
        %325 = vmatpush1.msra.mxu0 0.0
        %326 = vmatprep.subr.mxu0 0.0
        %327 = vmatpush1.msra.mxu0 0.0
        %328 = vmatprep.subr.mxu0 0.0
        %329 = vmatpush1.msra.mxu0 0.0
        %330 = vmatprep.subr.mxu0 0.0
        %331 = vmatpush1.msra.mxu0 0.0
        %332 = vmatprep.subr.mxu0 0.0
        %333 = vmatpush1.msra.mxu0 0.0
        %334 = vmatprep.subr.mxu0 0.0
        %335 = vmatpush1.msra.mxu0 0.0
        %336 = vmatprep.subr.mxu0 0.0
        %337 = vmatpush1.msra.mxu0 0.0
        %338 = vmatprep.subr.mxu0 0.0
        %339 = vmatpush1.msra.mxu0 0.0
        %340 = vmatprep.subr.mxu0 0.0
        %341 = vmatpush1.msra.mxu0 0.0
        %342 = vmatprep.subr.mxu0 0.0
        %343 = vmatpush1.msra.mxu0 %v312
        %344 = vmatprep.subr.mxu0 0.0
        %345 = vmatpush1.msra.mxu0 %v289
        %346 = vmatprep.subr.mxu0 0.0
        %347 = vmatpush2.msra.mxu0 0.0
        %348 = vmatprep.subr.mxu0 0.0
        %349 = vmatpush2.msra.mxu0 0.0
        %350 = vmatprep.subr.mxu0 0.0
        %351 = vmatpush2.msra.mxu0 0.0
        %352 = vmatprep.subr.mxu0 0.0
        %353 = vmatpush2.msra.mxu0 0.0
        %354 = vmatprep.subr.mxu0 0.0
        %355 = vmatpush2.msra.mxu0 0.0
        %356 = vmatprep.subr.mxu0 0.0
        %357 = vmatpush2.msra.mxu0 0.0
        %358 = vmatprep.subr.mxu0 0.0
        %359 = vmatpush2.msra.mxu0 0.0
        %360 = vmatprep.subr.mxu0 0.0
        %361 = vmatpush2.msra.mxu0 0.0
        %362 = vmatprep.subr.mxu0 0.0
        %363 = vmatpush2.msra.mxu0 0.0
        %364 = vmatprep.subr.mxu0 0.0
        %365 = vmatpush2.msra.mxu0 0.0
        %366 = vmatprep.subr.mxu0 0.0
        %367 = vmatpush2.msra.mxu0 0.0
        %368 = vmatprep.subr.mxu0 0.0
        %369 = vmatpush2.msra.mxu0 0.0
        %370 = vmatprep.subr.mxu0 0.0
        %371 = vmatpush2.msra.mxu0 0.0
        %372 = vmatprep.subr.mxu0 0.0
        %373 = vmatpush2.msra.mxu0 0.0
        %374 = vmatprep.subr.mxu0 0.0
        %375 = vmatpush2.msra.mxu0 0.0
        %376 = vmatprep.subr.mxu0 0.0
        %377 = vmatpush2.msra.mxu0 0.0
        %378 = vmatprep.mubr.f32.mxu0 0.0
        %379 = vmatmul.mubr.f32.gmra.mxu0 %v306
        %v380 = vpop.f32.mrf.mxu0
        %v381 = vadd.f32 %v297, %v380
        %v382 = vpop.f32.mrf.mxu0
        %383 = vmatprep.mubr.f32.mxu0 0.0
        %384 = vmatmul.mubr.f32.gmra.mxu0 %v309
        %v385 = vpop.f32.mrf.mxu0
        %v386 = vadd.f32 %v302, %v385
        %v387 = vpop.f32.mrf.mxu0
        %388 = vdwg.mxu0
        %vm389 = vcmask 130048
        %v390 = vsel %vm389, %v381, 0.0
        %391 = vadd.xlane.f32.xlu0 %v390
        %v392 = vpop.xlane.xlu0 %391
        %v393 = vsel %vm389, %v386, 0.0
        %394 = vadd.xlane.f32.xlu0 %v393
        %v395 = vpop.xlane.xlu0 %394
        %v396 = vmul.f32 %v381, %v381
        %v397 = vmul.f32 %v386, %v386
        %v398 = vsel %vm389, %v396, 0.0
        %399 = vadd.xlane.f32.xlu0 %v398
        %v400 = vpop.xlane.xlu0 %399
        %v401 = vsel %vm389, %v397, 0.0
        %402 = vadd.xlane.f32.xlu0 %v401
        %v403 = vpop.xlane.xlu0 %402
        %v404 = vsel %vm279, %v392, %v400
        %v405 = vsel %vm279, %v395, %v403
        %v406 = vld [vmem:[%s5] sm:$0xf]
        %v408 = vsel %vm389, %v406, 0
        %410 = vmatprep.subr.mxu0 0.0
        %411 = vmatpush1.msra.mxu0 0.0
        %412 = vmatprep.subr.mxu0 0.0
        %413 = vmatpush1.msra.mxu0 0.0
        %414 = vmatprep.subr.mxu0 0.0
        %415 = vmatpush1.msra.mxu0 0.0
        %416 = vmatprep.subr.mxu0 0.0
        %417 = vmatpush1.msra.mxu0 0.0
        %418 = vmatprep.subr.mxu0 0.0
        %419 = vmatpush1.msra.mxu0 0.0
        %420 = vmatprep.subr.mxu0 0.0
        %421 = vmatpush1.msra.mxu0 0.0
        %422 = vmatprep.subr.mxu0 0.0
        %423 = vmatpush1.msra.mxu0 0.0
        %424 = vmatprep.subr.mxu0 0.0
        %425 = vmatpush1.msra.mxu0 0.0
        %426 = vmatprep.subr.mxu0 0.0
        %427 = vmatpush1.msra.mxu0 0.0
        %428 = vmatprep.subr.mxu0 0.0
        %429 = vmatpush1.msra.mxu0 0.0
        %430 = vmatprep.subr.mxu0 0.0
        %431 = vmatpush1.msra.mxu0 0.0
        %432 = vmatprep.subr.mxu0 0.0
        %433 = vmatpush1.msra.mxu0 0.0
        %434 = vmatprep.subr.mxu0 0.0
        %435 = vmatpush1.msra.mxu0 0.0
        %436 = vmatprep.subr.mxu0 0.0
        %437 = vmatpush1.msra.mxu0 0.0
        %438 = vmatprep.subr.mxu0 0.0
        %439 = vmatpush1.msra.mxu0 %v405
        %440 = vmatprep.subr.mxu0 0.0
        %441 = vmatpush1.msra.mxu0 %v404
        %442 = vmatprep.subr.mxu0 0.0
        %443 = vmatpush2.msra.mxu0 0.0
        %444 = vmatprep.subr.mxu0 0.0
        %445 = vmatpush2.msra.mxu0 0.0
        %446 = vmatprep.subr.mxu0 0.0
        %447 = vmatpush2.msra.mxu0 0.0
        %448 = vmatprep.subr.mxu0 0.0
        %449 = vmatpush2.msra.mxu0 0.0
        %450 = vmatprep.subr.mxu0 0.0
        %451 = vmatpush2.msra.mxu0 0.0
        %452 = vmatprep.subr.mxu0 0.0
        %453 = vmatpush2.msra.mxu0 0.0
        %454 = vmatprep.subr.mxu0 0.0
        %455 = vmatpush2.msra.mxu0 0.0
        %456 = vmatprep.subr.mxu0 0.0
        %457 = vmatpush2.msra.mxu0 0.0
        %458 = vmatprep.subr.mxu0 0.0
        %459 = vmatpush2.msra.mxu0 0.0
        %460 = vmatprep.subr.mxu0 0.0
        %461 = vmatpush2.msra.mxu0 0.0
        %462 = vmatprep.subr.mxu0 0.0
        %463 = vmatpush2.msra.mxu0 0.0
        %464 = vmatprep.subr.mxu0 0.0
        %465 = vmatpush2.msra.mxu0 0.0
        %466 = vmatprep.subr.mxu0 0.0
        %467 = vmatpush2.msra.mxu0 0.0
        %468 = vmatprep.subr.mxu0 0.0
        %469 = vmatpush2.msra.mxu0 0.0
        %470 = vmatprep.subr.mxu0 0.0
        %471 = vmatpush2.msra.mxu0 0.0
        %472 = vmatprep.subr.mxu0 0.0
        %473 = vmatpush2.msra.mxu0 0.0
        %474 = vmatprep.mubr.f32.mxu0 0.0
        %475 = vmatmul.mubr.f32.gmra.mxu0 %v408
        %v476 = vpop.f32.mrf.mxu0
        %v477 = vadd.f32 0.0, %v476
        %v478 = vpop.f32.mrf.mxu0
        %479 = vdwg.mxu0
        %v480 = vld [vmem:[%s6] sm:$0xff]
        %v481 = vld [vmem:[%s6 + $0x8] sm:$0xff]
        %vm482 = vcmask 31744
        %v484 = vsel %vm482, %v480, 0
        %v487 = vsel %vm482, %v481, 0
        %v490 = vsel %vm288, %v477, 0
        %492 = vmatprep.subr.mxu0 0.0
        %493 = vmatpush1.msra.mxu0 0.0
        %494 = vmatprep.subr.mxu0 0.0
        %495 = vmatpush1.msra.mxu0 0.0
        %496 = vmatprep.subr.mxu0 0.0
        %497 = vmatpush1.msra.mxu0 0.0
        %498 = vmatprep.subr.mxu0 0.0
        %499 = vmatpush1.msra.mxu0 0.0
        %500 = vmatprep.subr.mxu0 0.0
        %501 = vmatpush1.msra.mxu0 0.0
        %502 = vmatprep.subr.mxu0 0.0
        %503 = vmatpush1.msra.mxu0 0.0
        %504 = vmatprep.subr.mxu0 0.0
        %505 = vmatpush1.msra.mxu0 0.0
        %506 = vmatprep.subr.mxu0 0.0
        %507 = vmatpush1.msra.mxu0 0.0
        %508 = vmatprep.subr.mxu0 0.0
        %509 = vmatpush1.msra.mxu0 0.0
        %510 = vmatprep.subr.mxu0 0.0
        %511 = vmatpush1.msra.mxu0 0.0
        %512 = vmatprep.subr.mxu0 0.0
        %513 = vmatpush1.msra.mxu0 0.0
        %514 = vmatprep.subr.mxu0 0.0
        %515 = vmatpush1.msra.mxu0 0.0
        %516 = vmatprep.subr.mxu0 0.0
        %517 = vmatpush1.msra.mxu0 0.0
        %518 = vmatprep.subr.mxu0 0.0
        %519 = vmatpush1.msra.mxu0 0.0
        %520 = vmatprep.subr.mxu0 0.0
        %521 = vmatpush1.msra.mxu0 0.0
        %522 = vmatprep.subr.mxu0 0.0
        %523 = vmatpush1.msra.mxu0 %v490
        %524 = vmatprep.subr.mxu0 0.0
        %525 = vmatpush2.msra.mxu0 0.0
        %526 = vmatprep.subr.mxu0 0.0
        %527 = vmatpush2.msra.mxu0 0.0
        %528 = vmatprep.subr.mxu0 0.0
        %529 = vmatpush2.msra.mxu0 0.0
        %530 = vmatprep.subr.mxu0 0.0
        %531 = vmatpush2.msra.mxu0 0.0
        %532 = vmatprep.subr.mxu0 0.0
        %533 = vmatpush2.msra.mxu0 0.0
        %534 = vmatprep.subr.mxu0 0.0
        %535 = vmatpush2.msra.mxu0 0.0
        %536 = vmatprep.subr.mxu0 0.0
        %537 = vmatpush2.msra.mxu0 0.0
        %538 = vmatprep.subr.mxu0 0.0
        %539 = vmatpush2.msra.mxu0 0.0
        %540 = vmatprep.subr.mxu0 0.0
        %541 = vmatpush2.msra.mxu0 0.0
        %542 = vmatprep.subr.mxu0 0.0
        %543 = vmatpush2.msra.mxu0 0.0
        %544 = vmatprep.subr.mxu0 0.0
        %545 = vmatpush2.msra.mxu0 0.0
        %546 = vmatprep.subr.mxu0 0.0
        %547 = vmatpush2.msra.mxu0 0.0
        %548 = vmatprep.subr.mxu0 0.0
        %549 = vmatpush2.msra.mxu0 0.0
        %550 = vmatprep.subr.mxu0 0.0
        %551 = vmatpush2.msra.mxu0 0.0
        %552 = vmatprep.subr.mxu0 0.0
        %553 = vmatpush2.msra.mxu0 0.0
        %554 = vmatprep.subr.mxu0 0.0
        %555 = vmatpush2.msra.mxu0 0.0
        %556 = vmatprep.mubr.f32.mxu0 0.0
        %557 = vmatmul.mubr.f32.gmra.mxu0 %v484
        %v558 = vpop.f32.mrf.mxu0
        %v559 = vadd.f32 0.0, %v558
        %v560 = vpop.f32.mrf.mxu0
        %561 = vmatprep.mubr.f32.mxu0 0.0
        %562 = vmatmul.mubr.f32.gmra.mxu0 %v487
        %v563 = vpop.f32.mrf.mxu0
        %v564 = vadd.f32 0.0, %v563
        %v565 = vpop.f32.mrf.mxu0
        %566 = vdwg.mxu0
        %v567 = vmul.f32 %v559, %v559
        %v568 = vmul.f32 %v564, %v564
        %571 = vrot.lane.b32.xlu0 %v567, 1
        %v572 = vpop.permute.xlu0 %571
        %573 = vrot.lane.b32.xlu0 %v568, 1
        %v574 = vpop.permute.xlu0 %573
        %v577 = vsub.f32 %v559, %v572
        %v578 = vsub.f32 %v564, %v574
        %v579 = vadd.f32 %v577, 1e-05
        %v580 = vadd.f32 %v578, 1e-05
        %v581 = vrsqrt.pop %v579
        %v582 = vrsqrt.pop %v580
        %584 = vset.pattern.permute.xlu0 0
        %585 = vperm.xlu0 %584, %v559
        %v586 = vpop.permute.xlu0 %585
        %589 = vset.pattern.permute.xlu0 0
        %590 = vperm.xlu0 %589, %v564
        %v591 = vpop.permute.xlu0 %590
        %v593 = vsub.f32 %v381, %v586
        %v594 = vsub.f32 %v386, %v591
        %v595 = vld [vmem:[%s3] sm:$0xff]
        %v596 = vld [vmem:[%s3 + $0x8] sm:$0xff]
        %599 = vrot.lane.b32.xlu0 %v595, 1
        %v600 = vpop.permute.xlu0 %599
        %601 = vrot.lane.b32.xlu0 %v596, 1
        %v602 = vpop.permute.xlu0 %601
        %v605 = vmul.f32 %v581, %v600
        %v606 = vmul.f32 %v582, %v602
        %608 = vset.pattern.permute.xlu0 1
        %609 = vperm.xlu0 %608, %v605
        %v610 = vpop.permute.xlu0 %609
        %613 = vset.pattern.permute.xlu0 1
        %614 = vperm.xlu0 %613, %v606
        %v615 = vpop.permute.xlu0 %614
        %v617 = vmul.f32 %v593, %v610
        %v618 = vmul.f32 %v594, %v615
        %v619 = vld [vmem:[%s4] sm:$0xff]
        %v620 = vld [vmem:[%s4 + $0x8] sm:$0xff]
        %622 = vset.pattern.permute.xlu0 0
        %623 = vperm.xlu0 %622, %v619
        %v624 = vpop.permute.xlu0 %623
        %627 = vset.pattern.permute.xlu0 0
        %628 = vperm.xlu0 %627, %v620
        %v629 = vpop.permute.xlu0 %628
        %v631 = vadd.f32 %v617, %v624
        %v632 = vadd.f32 %v618, %v629
        %v633 = vxor.u32 %v631, 2147483648
        %v634 = vxor.u32 %v632, 2147483648
        %v635 = vmul.f32 %v633, 1.442695
        %v636 = vpow.pop %v635
        %v637 = vmul.f32 %v634, 1.442695
        %v638 = vpow.pop %v637
        %v639 = vadd.f32 %v636, 1.0
        %v640 = vadd.f32 %v638, 1.0
        %v641 = vrcp.pop %v639
        %v642 = vmul.f32 1.0, %v641
        %v643 = vrcp.pop %v640
        %v644 = vmul.f32 1.0, %v643
        %v645 = vmul.f32 %v631, %v642
        %v646 = vmul.f32 %v632, %v644
        %647 = vst.msk [vmem:[%s269] sm:$0xff] %vm389, %v645
        %648 = vst.msk [vmem:[%s269 + $0x8] sm:$0xff] %vm389, %v646
        %s649 = sand.u32 %s181, 1
        %s650 = scalar_lea.sflag [#allocation3], %s649
        %s651 = sand.u32 %s181, 1
        %s652 = smul.addr %s651, 16
        %s653 = scalar_lea.vmem [#allocation2], %s652
        // Predicated region
        $region49: #{tpu_custom_call.1} parent=47 // pred_check
          %p654 = pneg %p191
        $region50: #{tpu_custom_call.1} parent=47 // pred_check_branch
          %656 = sbr.rel (%p654) target = $region52
        $region51: #{tpu_custom_call.1} parent=47 // pred_region
          %s658 = ssub.s32 256, 256
          %659 = vsyncadd %s650, %s658
          %s660 = smul.addr %s21, 2
          %s661 = smul.addr %s660, 128
          %s662 = scalar_lea.hbm %s7, %s661
          %s663 = sshll.u32 %s653, 4
          %s664 = int_to_ptr.vmem [resolvable:$true] %s663
          %669 = dma.vmem_to_hbm [thread:$0]  %s664, 256, %s662, %s650, 128, 128, 8
        $region52: #{tpu_custom_call.1} parent=47 // pred_fallthru
          _
      $region48: #{tpu_custom_call.1} parent=5 // pred_fallthru
        _
      %p670 = scmp.le.s32.totalorder 2, %s16
      // Predicated region
      $region53: #{tpu_custom_call.1} parent=5 // pred_check
        %p671 = pneg %p670
      $region54: #{tpu_custom_call.1} parent=5 // pred_check_branch
        %673 = sbr.rel (%p671) target = $region56
      $region55: #{tpu_custom_call.1} parent=5 // pred_region
        %s674 = ssub.s32 %s16, 2
        // Predicated region
        $region57: #{tpu_custom_call.1} parent=55 // pred_check
          %p675 = pneg %p197
        $region58: #{tpu_custom_call.1} parent=55 // pred_check_branch
          %677 = sbr.rel (%p675) target = $region60
        $region59: #{tpu_custom_call.1} parent=55 // pred_region
          %s678 = sand.u32 %s182, 1
          %s679 = scalar_lea.sflag [#allocation3], %s678
          %s680 = sand.u32 %s182, 1
          %s681 = smul.addr %s680, 16
          %s682 = scalar_lea.vmem [#allocation2], %s681
          %683 = dma.done %s679, 256
        $region60: #{tpu_custom_call.1} parent=55 // pred_fallthru
          _
      $region56: #{tpu_custom_call.1} parent=5 // pred_fallthru
        _
    $region6: #{tpu_custom_call.1} parent=1 // loop_footer
      %s20 = sadd.s32 1, %s16
    $region7: #{tpu_custom_call.1} parent=1 // loop_footer_branch
      %15 = sbr.rel target = $region3
    $region8: #{tpu_custom_call.1} parent=1 // loop_exit
      _
    %684 = vsyncpa [#allocation3], 1
    %s685 = scalar_lea.sflag [#allocation3], 1
    %686 = vsyncpa %s685, 1

</llo_original>
